<compile_context>
chip_gen: v6e
topology: v6e:2x2x1
jax: 0.10.0
libtpu: 0.0.40
codegen_flags: <defaults>
</compile_context>

<pallas_src>
import jax
import jax.numpy as jnp
from jax.experimental import pallas as pl
from jax.experimental.pallas import tpu as pltpu

IN_DIM = 784
HIDDEN_DIM = 100
OUT_DIM = 10

# Lane-padded (128-wide) hidden/output dims -> lane-dense, unmasked stores.
HID_PAD = 128
OUT_PAD = 128

MAX_TB = 1024     # batch tile cap (rows per grid step)


def _round_up(n, m):
    return ((n + m - 1) // m) * m


def _pick_tb(B):
    """Batch tile: >=2 grid steps when B > 8 (v7x megacore), sublane-aligned,
    capped at MAX_TB so double-buffered f32 x tiles stay well under the
    default scoped-VMEM limit on every generation (incl. v5e's 16 MiB)."""
    half = _round_up(max(-(-B // 2), 1), 8)
    return max(8, min(MAX_TB, half))


def mlp_kernel(x_ref, w1_ref, w2_ref, w3_ref, o_ref):
    # Weights (<0.25 MiB bf16 total) stay resident in VMEM; per grid step we
    # stream one (TB, 784) f32 batch tile and write one lane-dense
    # (TB, 128) bf16 output tile.  Accumulation is f32 on the MXU.
    x = x_ref[...].astype(jnp.bfloat16)                                # (TB, 784)
    h1 = jnp.dot(x, w1_ref[...], preferred_element_type=jnp.float32)   # (TB, 128)
    h1 = jnp.maximum(h1, 0.0).astype(jnp.bfloat16)
    h2 = jnp.dot(h1, w2_ref[...], preferred_element_type=jnp.float32)
    h2 = jnp.maximum(h2, 0.0).astype(jnp.bfloat16)
    out = jnp.dot(h2, w3_ref[...], preferred_element_type=jnp.float32)
    o_ref[...] = out.astype(o_ref.dtype)                               # (TB, 128) bf16


def prepare_weights(w1, w2, w3):
    """One-time (hoisted out of the per-call path) transpose to (in, out)
    layout, zero-pad the out dim to 128 lanes, cast to bf16.  Zero columns
    contribute exactly 0 through matmul+ReLU, so results are unchanged."""
    w1p = jnp.zeros((IN_DIM, HID_PAD), jnp.bfloat16).at[:, :HIDDEN_DIM].set(
        w1.T.astype(jnp.bfloat16))
    w2p = jnp.zeros((HID_PAD, HID_PAD), jnp.bfloat16).at[:HIDDEN_DIM, :HIDDEN_DIM].set(
        w2.T.astype(jnp.bfloat16))
    w3p = jnp.zeros((HID_PAD, OUT_PAD), jnp.bfloat16).at[:HIDDEN_DIM, :OUT_DIM].set(
        w3.T.astype(jnp.bfloat16))
    return w1p, w2p, w3p


@jax.jit
def mlp_forward(x, w1p, w2p, w3p):
    """x: any shape with 784 elements per row (e.g. (B,1,28,28)).
    w1p/w2p/w3p: padded bf16 weights from prepare_weights()."""
    xf = x.reshape(-1, IN_DIM)
    B = xf.shape[0]

    TB = _pick_tb(B)
    grid = (pl.cdiv(B, TB),)

    flops = 2 * B * (IN_DIM * HID_PAD + HID_PAD * HID_PAD + HID_PAD * OUT_PAD)
    bytes_accessed = (
        B * IN_DIM * 4                                                      # streamed x (f32)
        + (IN_DIM * HID_PAD + HID_PAD * HID_PAD + HID_PAD * OUT_PAD) * 2    # resident weights (bf16)
        + B * OUT_PAD * 2                                                   # output (bf16)
    )

    out = pl.pallas_call(
        mlp_kernel,
        out_shape=jax.ShapeDtypeStruct((B, OUT_PAD), jnp.bfloat16),
        grid_spec=pl.GridSpec(
            grid=grid,
            in_specs=[
                pl.BlockSpec((TB, IN_DIM), lambda i: (i, 0)),        # streamed batch tile
                pl.BlockSpec((IN_DIM, HID_PAD), lambda i: (0, 0)),   # resident weights
                pl.BlockSpec((HID_PAD, HID_PAD), lambda i: (0, 0)),
                pl.BlockSpec((HID_PAD, OUT_PAD), lambda i: (0, 0)),
            ],
            out_specs=pl.BlockSpec((TB, OUT_PAD), lambda i: (i, 0)),
        ),
        compiler_params=pltpu.CompilerParams(
            dimension_semantics=("parallel",),   # batch tiles shard over v7x's 2 TCs
        ),
        cost_estimate=pl.CostEstimate(
            flops=flops, transcendentals=0, bytes_accessed=bytes_accessed),
    )(xf, w1p, w2p, w3p)

    # Lane slice only (batch dim is exact, no padded rows to strip).
    return out[:, :OUT_DIM]


def init_params(key):
    """Deterministic init mimicking nn.Linear default (uniform +/- 1/sqrt(in)),
    weights kept in PyTorch (out, in) layout."""
    k1, k2, k3 = jax.random.split(key, 3)
    b1 = 1.0 / jnp.sqrt(IN_DIM)
    b2 = 1.0 / jnp.sqrt(HIDDEN_DIM)
    w1 = jax.random.uniform(k1, (HIDDEN_DIM, IN_DIM), jnp.float32, -b1, b1)
    w2 = jax.random.uniform(k2, (HIDDEN_DIM, HIDDEN_DIM), jnp.float32, -b2, b2)
    w3 = jax.random.uniform(k3, (OUT_DIM, HIDDEN_DIM), jnp.float32, -b2, b2)
    return w1, w2, w3


def reference_forward_f32(x, w1, w2, w3):
    """Pure-JAX f32 reference replicating the PyTorch forward exactly."""
    xf = x.reshape(-1, IN_DIM).astype(jnp.float32)
    h1 = jnp.maximum(xf @ w1.T, 0.0)
    h2 = jnp.maximum(h1 @ w2.T, 0.0)
    return h2 @ w3.T


def reference_forward_bf16(x, w1, w2, w3):
    """Pure-JAX reference matching the kernel's mixed-precision math
    (bf16 operands, f32 accumulation, f32 result before the final bf16 store)."""
    xf = x.reshape(-1, IN_DIM).astype(jnp.bfloat16)
    w1b, w2b, w3b = (w.T.astype(jnp.bfloat16) for w in (w1, w2, w3))
    h1 = jnp.maximum(
        jnp.dot(xf, w1b, preferred_element_type=jnp.float32), 0.0).astype(jnp.bfloat16)
    h2 = jnp.maximum(
        jnp.dot(h1, w2b, preferred_element_type=jnp.float32), 0.0).astype(jnp.bfloat16)
    return jnp.dot(h2, w3b, preferred_element_type=jnp.float32)


if __name__ == "__main__":
    key = jax.random.PRNGKey(0)
    kx, kp = jax.random.split(key)

    # MNIST-like input: (batch=2, channels=1, 28, 28) -> flattened to (2, 784)
    x = jax.random.normal(kx, (2, 1, 28, 28), dtype=jnp.float32)
    w1, w2, w3 = init_params(kp)

    # One-time weight prep (transpose + pad + bf16 cast), outside the hot path.
    w1p, w2p, w3p = prepare_weights(w1, w2, w3)

    out = mlp_forward(x, w1p, w2p, w3p)
    out = jax.block_until_ready(out)
    assert out.shape == (2, OUT_DIM), out.shape
    out_f32 = out.astype(jnp.float32)

    # Tight check vs. a reference using the same mixed-precision recipe
    # (only the final bf16 store rounding differs).
    ref_bf16 = reference_forward_bf16(x, w1, w2, w3)
    assert jnp.allclose(out_f32, ref_bf16, atol=1e-2, rtol=1e-2), (
        float(jnp.max(jnp.abs(out_f32 - ref_bf16))))

    # Looser sanity check vs. the exact f32 PyTorch-equivalent math.
    ref_f32 = reference_forward_f32(x, w1, w2, w3)
    assert jnp.allclose(out_f32, ref_f32, atol=5e-2, rtol=5e-2), (
        float(jnp.max(jnp.abs(out_f32 - ref_f32))))

    print("KERNEL_OK")
</pallas_src>

<mosaic_0001>
module attributes {stable_mosaic.version = 11 : i64} {
  func.func @mlp_kernel(%arg0: i32, %arg1: memref<8x784xf32, #tpu.memory_space<vmem>>, %arg2: memref<784x128xbf16, #tpu.memory_space<vmem>>, %arg3: memref<128x128xbf16, #tpu.memory_space<vmem>>, %arg4: memref<128x128xbf16, #tpu.memory_space<vmem>>, %arg5: memref<8x128xbf16, #tpu.memory_space<vmem>>) attributes {dimension_semantics = [#tpu.dimension_semantics<parallel>], iteration_bounds = array<i64: 1>, scalar_prefetch = 0 : i64, scratch_operands = 0 : i64, tpu.core_type = #tpu.core_type<tc>, window_params = [{transform_indices = @transform_0, window_bounds = array<i64: 8, 784>}, {pipeline_mode = #tpu.pipeline_mode<synchronous>, transform_indices = @transform_1, window_bounds = array<i64: 784, 128>}, {pipeline_mode = #tpu.pipeline_mode<synchronous>, transform_indices = @transform_2, window_bounds = array<i64: 128, 128>}, {pipeline_mode = #tpu.pipeline_mode<synchronous>, transform_indices = @transform_3, window_bounds = array<i64: 128, 128>}, {transform_indices = @transform_4, window_bounds = array<i64: 8, 128>}]} {
    %c0 = arith.constant 0 : index
    %c0_0 = arith.constant 0 : index
    %0 = vector.load %arg1[%c0, %c0_0] : memref<8x784xf32, #tpu.memory_space<vmem>>, vector<8x784xf32>
    %1 = arith.truncf %0 : vector<8x784xf32> to vector<8x784xbf16>
    %c0_1 = arith.constant 0 : index
    %c0_2 = arith.constant 0 : index
    %2 = vector.load %arg2[%c0_1, %c0_2] : memref<784x128xbf16, #tpu.memory_space<vmem>>, vector<784x128xbf16>
    %cst = arith.constant dense<0.000000e+00> : vector<8x128xf32>
    %3 = tpu.matmul %1, %2, %cst {dimension_numbers = #tpu.dot_dimension_numbers<[1], [0], [0], [1], [0, 0, 1, 1], [], []>} : vector<8x784xbf16>, vector<784x128xbf16>, vector<8x128xf32> -> vector<8x128xf32>
    %cst_3 = arith.constant 0.000000e+00 : f32
    %4 = vector.broadcast %cst_3 : f32 to vector<8x128xf32>
    %5 = arith.maximumf %3, %4 : vector<8x128xf32>
    %6 = arith.truncf %5 : vector<8x128xf32> to vector<8x128xbf16>
    %c0_4 = arith.constant 0 : index
    %c0_5 = arith.constant 0 : index
    %7 = vector.load %arg3[%c0_4, %c0_5] : memref<128x128xbf16, #tpu.memory_space<vmem>>, vector<128x128xbf16>
    %cst_6 = arith.constant dense<0.000000e+00> : vector<8x128xf32>
    %8 = tpu.matmul %6, %7, %cst_6 {dimension_numbers = #tpu.dot_dimension_numbers<[1], [0], [0], [1], [0, 0, 1, 1], [], []>} : vector<8x128xbf16>, vector<128x128xbf16>, vector<8x128xf32> -> vector<8x128xf32>
    %cst_7 = arith.constant 0.000000e+00 : f32
    %9 = vector.broadcast %cst_7 : f32 to vector<8x128xf32>
    %10 = arith.maximumf %8, %9 : vector<8x128xf32>
    %11 = arith.truncf %10 : vector<8x128xf32> to vector<8x128xbf16>
    %c0_8 = arith.constant 0 : index
    %c0_9 = arith.constant 0 : index
    %12 = vector.load %arg4[%c0_8, %c0_9] : memref<128x128xbf16, #tpu.memory_space<vmem>>, vector<128x128xbf16>
    %cst_10 = arith.constant dense<0.000000e+00> : vector<8x128xf32>
    %13 = tpu.matmul %11, %12, %cst_10 {dimension_numbers = #tpu.dot_dimension_numbers<[1], [0], [0], [1], [0, 0, 1, 1], [], []>} : vector<8x128xbf16>, vector<128x128xbf16>, vector<8x128xf32> -> vector<8x128xf32>
    %14 = arith.truncf %13 : vector<8x128xf32> to vector<8x128xbf16>
    %c0_11 = arith.constant 0 : index
    %c0_12 = arith.constant 0 : index
    %15 = vector.load %arg5[%c0_11, %c0_12] : memref<8x128xbf16, #tpu.memory_space<vmem>>, vector<8x128xbf16>
    tpu.vector_store %arg5[%c0_11, %c0_12], %14 {strides = array<i32>} : memref<8x128xbf16, #tpu.memory_space<vmem>>, vector<8x128xbf16>,
    return
  }
  func.func @transform_0(%arg0: i32) -> (i32, i32) {
    %c0_i32 = arith.constant 0 : i32
    %c0_i32_0 = arith.constant 0 : i32
    return %arg0, %c0_i32 : i32, i32
  }
  func.func @transform_1(%arg0: i32) -> (i32, i32) {
    %c0_i32 = arith.constant 0 : i32
    %c0_i32_0 = arith.constant 0 : i32
    %c0_i32_1 = arith.constant 0 : i32
    return %c0_i32, %c0_i32_0 : i32, i32
  }
  func.func @transform_2(%arg0: i32) -> (i32, i32) {
    %c0_i32 = arith.constant 0 : i32
    %c0_i32_0 = arith.constant 0 : i32
    %c0_i32_1 = arith.constant 0 : i32
    return %c0_i32, %c0_i32_0 : i32, i32
  }
  func.func @transform_3(%arg0: i32) -> (i32, i32) {
    %c0_i32 = arith.constant 0 : i32
    %c0_i32_0 = arith.constant 0 : i32
    %c0_i32_1 = arith.constant 0 : i32
    return %c0_i32, %c0_i32_0 : i32, i32
  }
  func.func @transform_4(%arg0: i32) -> (i32, i32) {
    %c0_i32 = arith.constant 0 : i32
    %c0_i32_0 = arith.constant 0 : i32
    return %arg0, %c0_i32 : i32, i32
  }
}

</mosaic_0001>

<llo_original>
// kernel: mlp_forward.1
$region0: #{mlp_forward.1}
  #allocation0 [shape = 'u32[]', space=smem, size = 0x4, offset = 0x4, fixed_abs, tag = 'smem constant byte address 0x4 - core index']
  #allocation1 [shape = 'u32[144,128]{1,0:T(1,128)}', space=vmem, size = 0x12000, scoped, tag = 'internal scratch']
  %s0 = inlined_call_operand.vmem [shape: f32[2,784], index: 0, kind: input, shape index: {}]
  %s1 = inlined_call_operand.hbm [shape: bf16[784,128], index: 1, kind: input, shape index: {}]
  %s2 = inlined_call_operand.vmem [shape: bf16[128,128], index: 2, kind: input, shape index: {}]
  %s3 = inlined_call_operand.vmem [shape: bf16[128,128], index: 3, kind: input, shape index: {}]
  %s4 = inlined_call_operand.hbm [shape: bf16[2,128], index: 4, kind: output, shape index: {}]
  %s5 = sld [smem:[#allocation0]]
  $region30: #{mlp_forward.1} parent=0
    _
  %s7 = ssub.s32 1, %s5
  %s8 = scalar_select 0, %s7, %s5
  $region1: #{mlp_forward.1} parent=0
    #allocation2 [shape = 'u8[200704]{0}', space=vmem, size = 0x31000, scoped, tag = 'input window, operand 1, single buffered']
    #allocation3 [shape = 's32[1]{0}', space=sflag, size = 0x4, scoped, tag = 'scoped memory for mlp_forward.1']
    #allocation4 [shape = 's32[1]{0}', space=sflag, size = 0x4, scoped, tag = 'scoped memory for mlp_forward.1']
    #allocation5 [shape = 'u8[2048]{0}', space=vmem, size = 0x800, scoped, tag = 'output window, operand 0, single buffered']
    %9 = vsyncpa [#allocation3], 0
    %10 = vsyncpa [#allocation4], 0
    // Predicated region
    $region2: #{mlp_forward.1} parent=1 // pred_check
      _
    $region3: #{mlp_forward.1} parent=1 // pred_check_branch
      %12 = sbr.rel (0) target = $region5
    $region4: #{mlp_forward.1} parent=1 // pred_region
      _
    $region5: #{mlp_forward.1} parent=1 // pred_fallthru
      _
    // Predicated region
    $region6: #{mlp_forward.1} parent=1 // pred_check
      _
    $region7: #{mlp_forward.1} parent=1 // pred_check_branch
      %14 = sbr.rel (0) target = $region9
    $region8: #{mlp_forward.1} parent=1 // pred_region
      %s16 = ssub.s32 6272, 6272
      %17 = vsyncadd [#allocation3], %s16
      %s18 = sshll.u32 [#allocation2], 4
      %s19 = int_to_ptr.vmem [resolvable:$true] %s18
      %24 = dma.hbm_to_vmem [thread:$0]  %s1, 6272, %s19, [#allocation3], 64, 64, 4
    $region9: #{mlp_forward.1} parent=1 // pred_fallthru
      _
    // Predicated region
    $region10: #{mlp_forward.1} parent=1 // pred_check
      _
    $region11: #{mlp_forward.1} parent=1 // pred_check_branch
      %26 = sbr.rel (0) target = $region13
    $region12: #{mlp_forward.1} parent=1 // pred_region
      _
    $region13: #{mlp_forward.1} parent=1 // pred_fallthru
      _
    // Predicated region
    $region14: #{mlp_forward.1} parent=1 // pred_check
      _
    $region15: #{mlp_forward.1} parent=1 // pred_check_branch
      %28 = sbr.rel (0) target = $region17
    $region16: #{mlp_forward.1} parent=1 // pred_region
      _
    $region17: #{mlp_forward.1} parent=1 // pred_fallthru
      _
    // Predicated region
    $region18: #{mlp_forward.1} parent=1 // pred_check
      _
    $region19: #{mlp_forward.1} parent=1 // pred_check_branch
      %30 = sbr.rel (0) target = $region21
    $region20: #{mlp_forward.1} parent=1 // pred_region
      %31 = dma.done [#allocation3], 6272
    $region21: #{mlp_forward.1} parent=1 // pred_fallthru
      _
    %v33 = vld [vmem:[%s0] sm:$0xff]
    %v34 = vld [vmem:[%s0 + $0x8] sm:$0x3f]
    %v35 = vld [vmem:[%s0 + $0xe] sm:$0xff]
    %v36 = vld [vmem:[%s0 + $0x16] sm:$0x3f]
    %v37 = vld [vmem:[%s0 + $0x1c] sm:$0xff]
    %v38 = vld [vmem:[%s0 + $0x24] sm:$0x3f]
    %v39 = vld [vmem:[%s0 + $0x2a] sm:$0xff]
    %v40 = vld [vmem:[%s0 + $0x32] sm:$0x3f]
    %v49 = vcombine.low %v33, %v35
    %v50 = vcombine.high %v33, %v35
    %v51 = vcombine.low %v37, %v39
    %v52 = vcombine.high %v37, %v39
    %v54 = vunpack.c.l.s4 1983009808
    %v55 = vunpack.c.0.s8 %v54
    %v56 = vlaneseq
    %v57 = vshrl.u32 %v56, 7
    %v58 = vsub.s32 %v55, %v57
    %v59 = vrot.slane %v49, %v58
    %v61 = vunpack.c.l.s4 1983009808
    %v62 = vunpack.c.0.s8 %v61
    %v63 = vlaneseq
    %v64 = vshrl.u32 %v63, 7
    %v65 = vsub.s32 %v62, %v64
    %v66 = vrot.slane %v50, %v65
    %v68 = vunpack.c.l.s4 1983009808
    %v69 = vunpack.c.0.s8 %v68
    %v70 = vlaneseq
    %v71 = vshrl.u32 %v70, 7
    %v72 = vsub.s32 %v69, %v71
    %v73 = vrot.slane %v51, %v72
    %v75 = vunpack.c.l.s4 1983009808
    %v76 = vunpack.c.0.s8 %v75
    %v77 = vlaneseq
    %v78 = vshrl.u32 %v77, 7
    %v79 = vsub.s32 %v76, %v78
    %v80 = vrot.slane %v52, %v79
    %v81 = vcombine.low %v59, %v73
    %v82 = vcombine.high %v59, %v73
    %v83 = vcombine.low %v66, %v80
    %v84 = vcombine.high %v66, %v80
    %v85 = vcombine.low %v34, %v36
    %v86 = vcombine.high %v34, %v36
    %v87 = vcombine.low %v38, %v40
    %v88 = vcombine.high %v38, %v40
    %v90 = vunpack.c.l.s4 1983009808
    %v91 = vunpack.c.0.s8 %v90
    %v92 = vlaneseq
    %v93 = vshrl.u32 %v92, 7
    %v94 = vsub.s32 %v91, %v93
    %v95 = vrot.slane %v85, %v94
    %v97 = vunpack.c.l.s4 1983009808
    %v98 = vunpack.c.0.s8 %v97
    %v99 = vlaneseq
    %v100 = vshrl.u32 %v99, 7
    %v101 = vsub.s32 %v98, %v100
    %v102 = vrot.slane %v86, %v101
    %v104 = vunpack.c.l.s4 1983009808
    %v105 = vunpack.c.0.s8 %v104
    %v106 = vlaneseq
    %v107 = vshrl.u32 %v106, 7
    %v108 = vsub.s32 %v105, %v107
    %v109 = vrot.slane %v87, %v108
    %v111 = vunpack.c.l.s4 1983009808
    %v112 = vunpack.c.0.s8 %v111
    %v113 = vlaneseq
    %v114 = vshrl.u32 %v113, 7
    %v115 = vsub.s32 %v112, %v114
    %v116 = vrot.slane %v88, %v115
    %v117 = vcombine.low %v95, %v109
    %v118 = vcombine.high %v95, %v109
    %v119 = vcombine.low %v102, %v116
    %v127 = vpack.c.bf16 %v81, %v81
    %v128 = vpack.c.bf16 %v82, %v82
    %v129 = vpack.c.bf16 %v83, %v83
    %v130 = vpack.c.bf16 %v84, %v84
    %v131 = vpack.c.bf16 %v117, %v117
    %v132 = vpack.c.bf16 %v118, %v118
    %v133 = vpack.c.bf16 %v119, %v119
    %v134 = vld [vmem:[#allocation2] sm:$0xf]
    %v135 = vld [vmem:[#allocation2 + $0x4] sm:$0xf]
    %v136 = vld [vmem:[#allocation2 + $0x8] sm:$0xf]
    %v137 = vld [vmem:[#allocation2 + $0xc] sm:$0xf]
    %v138 = vld [vmem:[#allocation2 + $0x10] sm:$0xf]
    %v139 = vld [vmem:[#allocation2 + $0x14] sm:$0xf]
    %v140 = vld [vmem:[#allocation2 + $0x18] sm:$0xf]
    %v141 = vld [vmem:[#allocation2 + $0x1c] sm:$0xf]
    %v142 = vld [vmem:[#allocation2 + $0x20] sm:$0xf]
    %v143 = vld [vmem:[#allocation2 + $0x24] sm:$0xf]
    %v144 = vld [vmem:[#allocation2 + $0x28] sm:$0xf]
    %v145 = vld [vmem:[#allocation2 + $0x2c] sm:$0xf]
    %v146 = vld [vmem:[#allocation2 + $0x30] sm:$0xf]
    %v147 = vld [vmem:[#allocation2 + $0x34] sm:$0xf]
    %v148 = vld [vmem:[#allocation2 + $0x38] sm:$0xf]
    %v149 = vld [vmem:[#allocation2 + $0x3c] sm:$0xf]
    %v150 = vld [vmem:[#allocation2 + $0x40] sm:$0xf]
    %v151 = vld [vmem:[#allocation2 + $0x44] sm:$0xf]
    %v152 = vld [vmem:[#allocation2 + $0x48] sm:$0xf]
    %v153 = vld [vmem:[#allocation2 + $0x4c] sm:$0xf]
    %v154 = vld [vmem:[#allocation2 + $0x50] sm:$0xf]
    %v155 = vld [vmem:[#allocation2 + $0x54] sm:$0xf]
    %v156 = vld [vmem:[#allocation2 + $0x58] sm:$0xf]
    %v157 = vld [vmem:[#allocation2 + $0x5c] sm:$0xf]
    %v158 = vld [vmem:[#allocation2 + $0x60] sm:$0xf]
    %v159 = vld [vmem:[#allocation2 + $0x64] sm:$0xf]
    %v160 = vld [vmem:[#allocation2 + $0x68] sm:$0xf]
    %v161 = vld [vmem:[#allocation2 + $0x6c] sm:$0xf]
    %v162 = vld [vmem:[#allocation2 + $0x70] sm:$0xf]
    %v163 = vld [vmem:[#allocation2 + $0x74] sm:$0xf]
    %v164 = vld [vmem:[#allocation2 + $0x78] sm:$0xf]
    %v165 = vld [vmem:[#allocation2 + $0x7c] sm:$0xf]
    %v166 = vld [vmem:[#allocation2 + $0x80] sm:$0xf]
    %v167 = vld [vmem:[#allocation2 + $0x84] sm:$0xf]
    %v168 = vld [vmem:[#allocation2 + $0x88] sm:$0xf]
    %v169 = vld [vmem:[#allocation2 + $0x8c] sm:$0xf]
    %v170 = vld [vmem:[#allocation2 + $0x90] sm:$0xf]
    %v171 = vld [vmem:[#allocation2 + $0x94] sm:$0xf]
    %v172 = vld [vmem:[#allocation2 + $0x98] sm:$0xf]
    %v173 = vld [vmem:[#allocation2 + $0x9c] sm:$0xf]
    %v174 = vld [vmem:[#allocation2 + $0xa0] sm:$0xf]
    %v175 = vld [vmem:[#allocation2 + $0xa4] sm:$0xf]
    %v176 = vld [vmem:[#allocation2 + $0xa8] sm:$0xf]
    %v177 = vld [vmem:[#allocation2 + $0xac] sm:$0xf]
    %v178 = vld [vmem:[#allocation2 + $0xb0] sm:$0xf]
    %v179 = vld [vmem:[#allocation2 + $0xb4] sm:$0xf]
    %v180 = vld [vmem:[#allocation2 + $0xb8] sm:$0xf]
    %v181 = vld [vmem:[#allocation2 + $0xbc] sm:$0xf]
    %v182 = vld [vmem:[#allocation2 + $0xc0] sm:$0xf]
    %v183 = vld [vmem:[#allocation2 + $0xc4] sm:$0xf]
    %v184 = vld [vmem:[#allocation2 + $0xc8] sm:$0xf]
    %v185 = vld [vmem:[#allocation2 + $0xcc] sm:$0xf]
    %v186 = vld [vmem:[#allocation2 + $0xd0] sm:$0xf]
    %v187 = vld [vmem:[#allocation2 + $0xd4] sm:$0xf]
    %v188 = vld [vmem:[#allocation2 + $0xd8] sm:$0xf]
    %v189 = vld [vmem:[#allocation2 + $0xdc] sm:$0xf]
    %v190 = vld [vmem:[#allocation2 + $0xe0] sm:$0xf]
    %v191 = vld [vmem:[#allocation2 + $0xe4] sm:$0xf]
    %v192 = vld [vmem:[#allocation2 + $0xe8] sm:$0xf]
    %v193 = vld [vmem:[#allocation2 + $0xec] sm:$0xf]
    %v194 = vld [vmem:[#allocation2 + $0xf0] sm:$0xf]
    %v195 = vld [vmem:[#allocation2 + $0xf4] sm:$0xf]
    %v196 = vld [vmem:[#allocation2 + $0xf8] sm:$0xf]
    %v197 = vld [vmem:[#allocation2 + $0xfc] sm:$0xf]
    %v198 = vld [vmem:[#allocation2 + $0x100] sm:$0xf]
    %v199 = vld [vmem:[#allocation2 + $0x104] sm:$0xf]
    %v200 = vld [vmem:[#allocation2 + $0x108] sm:$0xf]
    %v201 = vld [vmem:[#allocation2 + $0x10c] sm:$0xf]
    %v202 = vld [vmem:[#allocation2 + $0x110] sm:$0xf]
    %v203 = vld [vmem:[#allocation2 + $0x114] sm:$0xf]
    %v204 = vld [vmem:[#allocation2 + $0x118] sm:$0xf]
    %v205 = vld [vmem:[#allocation2 + $0x11c] sm:$0xf]
    %v206 = vld [vmem:[#allocation2 + $0x120] sm:$0xf]
    %v207 = vld [vmem:[#allocation2 + $0x124] sm:$0xf]
    %v208 = vld [vmem:[#allocation2 + $0x128] sm:$0xf]
    %v209 = vld [vmem:[#allocation2 + $0x12c] sm:$0xf]
    %v210 = vld [vmem:[#allocation2 + $0x130] sm:$0xf]
    %v211 = vld [vmem:[#allocation2 + $0x134] sm:$0xf]
    %v212 = vld [vmem:[#allocation2 + $0x138] sm:$0xf]
    %v213 = vld [vmem:[#allocation2 + $0x13c] sm:$0xf]
    %v214 = vld [vmem:[#allocation2 + $0x140] sm:$0xf]
    %v215 = vld [vmem:[#allocation2 + $0x144] sm:$0xf]
    %v216 = vld [vmem:[#allocation2 + $0x148] sm:$0xf]
    %v217 = vld [vmem:[#allocation2 + $0x14c] sm:$0xf]
    %v218 = vld [vmem:[#allocation2 + $0x150] sm:$0xf]
    %v219 = vld [vmem:[#allocation2 + $0x154] sm:$0xf]
    %v220 = vld [vmem:[#allocation2 + $0x158] sm:$0xf]
    %v221 = vld [vmem:[#allocation2 + $0x15c] sm:$0xf]
    %v222 = vld [vmem:[#allocation2 + $0x160] sm:$0xf]
    %v223 = vld [vmem:[#allocation2 + $0x164] sm:$0xf]
    %v224 = vld [vmem:[#allocation2 + $0x168] sm:$0xf]
    %v225 = vld [vmem:[#allocation2 + $0x16c] sm:$0xf]
    %v226 = vld [vmem:[#allocation2 + $0x170] sm:$0xf]
    %v227 = vld [vmem:[#allocation2 + $0x174] sm:$0xf]
    %v228 = vld [vmem:[#allocation2 + $0x178] sm:$0xf]
    %v229 = vld [vmem:[#allocation2 + $0x17c] sm:$0xf]
    %v230 = vld [vmem:[#allocation2 + $0x180] sm:$0xf]
    %v231 = vld [vmem:[#allocation2 + $0x184] sm:$0xf]
    %v330 = vunpack.c.l.b16 %v134
    %v331 = vunpack.c.l.b16 %v135
    %v332 = vunpack.c.l.b16 %v136
    %v333 = vunpack.c.l.b16 %v137
    %v334 = vunpack.c.l.b16 %v138
    %v335 = vunpack.c.l.b16 %v139
    %v336 = vunpack.c.l.b16 %v140
    %v337 = vunpack.c.l.b16 %v141
    %v338 = vunpack.c.l.b16 %v142
    %v339 = vunpack.c.l.b16 %v143
    %v340 = vunpack.c.l.b16 %v144
    %v341 = vunpack.c.l.b16 %v145
    %v342 = vunpack.c.l.b16 %v146
    %v343 = vunpack.c.l.b16 %v147
    %v344 = vunpack.c.l.b16 %v148
    %v345 = vunpack.c.l.b16 %v149
    %v346 = vunpack.c.l.b16 %v150
    %v347 = vunpack.c.l.b16 %v151
    %v348 = vunpack.c.l.b16 %v152
    %v349 = vunpack.c.l.b16 %v153
    %v350 = vunpack.c.l.b16 %v154
    %v351 = vunpack.c.l.b16 %v155
    %v352 = vunpack.c.l.b16 %v156
    %v353 = vunpack.c.l.b16 %v157
    %v354 = vunpack.c.l.b16 %v158
    %v355 = vunpack.c.l.b16 %v159
    %v356 = vunpack.c.l.b16 %v160
    %v357 = vunpack.c.l.b16 %v161
    %v358 = vunpack.c.l.b16 %v162
    %v359 = vunpack.c.l.b16 %v163
    %v360 = vunpack.c.l.b16 %v164
    %v361 = vunpack.c.l.b16 %v165
    %v362 = vunpack.c.l.b16 %v166
    %v363 = vunpack.c.l.b16 %v167
    %v364 = vunpack.c.l.b16 %v168
    %v365 = vunpack.c.l.b16 %v169
    %v366 = vunpack.c.l.b16 %v170
    %v367 = vunpack.c.l.b16 %v171
    %v368 = vunpack.c.l.b16 %v172
    %v369 = vunpack.c.l.b16 %v173
    %v370 = vunpack.c.l.b16 %v174
    %v371 = vunpack.c.l.b16 %v175
    %v372 = vunpack.c.l.b16 %v176
    %v373 = vunpack.c.l.b16 %v177
    %v374 = vunpack.c.l.b16 %v178
    %v375 = vunpack.c.l.b16 %v179
    %v376 = vunpack.c.l.b16 %v180
    %v377 = vunpack.c.l.b16 %v181
    %v378 = vunpack.c.l.b16 %v182
    %v379 = vunpack.c.l.b16 %v183
    %v380 = vunpack.c.l.b16 %v184
    %v381 = vunpack.c.l.b16 %v185
    %v382 = vunpack.c.l.b16 %v186
    %v383 = vunpack.c.l.b16 %v187
    %v384 = vunpack.c.l.b16 %v188
    %v385 = vunpack.c.l.b16 %v189
    %v386 = vunpack.c.l.b16 %v190
    %v387 = vunpack.c.l.b16 %v191
    %v388 = vunpack.c.l.b16 %v192
    %v389 = vunpack.c.l.b16 %v193
    %v390 = vunpack.c.l.b16 %v194
    %v391 = vunpack.c.l.b16 %v195
    %v392 = vunpack.c.l.b16 %v196
    %v393 = vunpack.c.l.b16 %v197
    %v394 = vunpack.c.l.b16 %v198
    %v395 = vunpack.c.l.b16 %v199
    %v396 = vunpack.c.l.b16 %v200
    %v397 = vunpack.c.l.b16 %v201
    %v398 = vunpack.c.l.b16 %v202
    %v399 = vunpack.c.l.b16 %v203
    %v400 = vunpack.c.l.b16 %v204
    %v401 = vunpack.c.l.b16 %v205
    %v402 = vunpack.c.l.b16 %v206
    %v403 = vunpack.c.l.b16 %v207
    %v404 = vunpack.c.l.b16 %v208
    %v405 = vunpack.c.l.b16 %v209
    %v406 = vunpack.c.l.b16 %v210
    %v407 = vunpack.c.l.b16 %v211
    %v408 = vunpack.c.l.b16 %v212
    %v409 = vunpack.c.l.b16 %v213
    %v410 = vunpack.c.l.b16 %v214
    %v411 = vunpack.c.l.b16 %v215
    %v412 = vunpack.c.l.b16 %v216
    %v413 = vunpack.c.l.b16 %v217
    %v414 = vunpack.c.l.b16 %v218
    %v415 = vunpack.c.l.b16 %v219
    %v416 = vunpack.c.l.b16 %v220
    %v417 = vunpack.c.l.b16 %v221
    %v418 = vunpack.c.l.b16 %v222
    %v419 = vunpack.c.l.b16 %v223
    %v420 = vunpack.c.l.b16 %v224
    %v421 = vunpack.c.l.b16 %v225
    %v422 = vunpack.c.l.b16 %v226
    %v423 = vunpack.c.l.b16 %v227
    %v424 = vunpack.c.l.b16 %v228
    %v425 = vunpack.c.l.b16 %v229
    %v426 = vunpack.c.l.b16 %v230
    %v427 = vunpack.c.l.b16 %v231
    %v428 = vpack.c.b16 %v331, %v330
    %v429 = vpack.c.b16 %v333, %v332
    %v430 = vpack.c.b16 %v335, %v334
    %v431 = vpack.c.b16 %v337, %v336
    %v432 = vpack.c.b16 %v339, %v338
    %v433 = vpack.c.b16 %v341, %v340
    %v434 = vpack.c.b16 %v343, %v342
    %v435 = vpack.c.b16 %v345, %v344
    %v436 = vpack.c.b16 %v347, %v346
    %v437 = vpack.c.b16 %v349, %v348
    %v438 = vpack.c.b16 %v351, %v350
    %v439 = vpack.c.b16 %v353, %v352
    %v440 = vpack.c.b16 %v355, %v354
    %v441 = vpack.c.b16 %v357, %v356
    %v442 = vpack.c.b16 %v359, %v358
    %v443 = vpack.c.b16 %v361, %v360
    %v444 = vpack.c.b16 %v363, %v362
    %v445 = vpack.c.b16 %v365, %v364
    %v446 = vpack.c.b16 %v367, %v366
    %v447 = vpack.c.b16 %v369, %v368
    %v448 = vpack.c.b16 %v371, %v370
    %v449 = vpack.c.b16 %v373, %v372
    %v450 = vpack.c.b16 %v375, %v374
    %v451 = vpack.c.b16 %v377, %v376
    %v452 = vpack.c.b16 %v379, %v378
    %v453 = vpack.c.b16 %v381, %v380
    %v454 = vpack.c.b16 %v383, %v382
    %v455 = vpack.c.b16 %v385, %v384
    %v456 = vpack.c.b16 %v387, %v386
    %v457 = vpack.c.b16 %v389, %v388
    %v458 = vpack.c.b16 %v391, %v390
    %v459 = vpack.c.b16 %v393, %v392
    %v460 = vpack.c.b16 %v395, %v394
    %v461 = vpack.c.b16 %v397, %v396
    %v462 = vpack.c.b16 %v399, %v398
    %v463 = vpack.c.b16 %v401, %v400
    %v464 = vpack.c.b16 %v403, %v402
    %v465 = vpack.c.b16 %v405, %v404
    %v466 = vpack.c.b16 %v407, %v406
    %v467 = vpack.c.b16 %v409, %v408
    %v468 = vpack.c.b16 %v411, %v410
    %v469 = vpack.c.b16 %v413, %v412
    %v470 = vpack.c.b16 %v415, %v414
    %v471 = vpack.c.b16 %v417, %v416
    %v472 = vpack.c.b16 %v419, %v418
    %v473 = vpack.c.b16 %v421, %v420
    %v474 = vpack.c.b16 %v423, %v422
    %v475 = vpack.c.b16 %v425, %v424
    %v476 = vpack.c.b16 %v427, %v426
    %vm526 = vcmask 130048
    %v528 = vsel %vm526, %v133, 0
    %530 = vmatprep.subr.bf16.mxu0 0
    %531 = vmatpush1.bf16.msra.mxu0 %v435
    %532 = vmatprep.subr.bf16.mxu0 0
    %533 = vmatpush1.bf16.msra.mxu0 %v434
    %534 = vmatprep.subr.bf16.mxu0 0
    %535 = vmatpush1.bf16.msra.mxu0 %v433
    %536 = vmatprep.subr.bf16.mxu0 0
    %537 = vmatpush1.bf16.msra.mxu0 %v432
    %538 = vmatprep.subr.bf16.mxu0 0
    %539 = vmatpush1.bf16.msra.mxu0 %v431
    %540 = vmatprep.subr.bf16.mxu0 0
    %541 = vmatpush1.bf16.msra.mxu0 %v430
    %542 = vmatprep.subr.bf16.mxu0 0
    %543 = vmatpush1.bf16.msra.mxu0 %v429
    %544 = vmatprep.subr.bf16.mxu0 0
    %545 = vmatpush1.bf16.msra.mxu0 %v428
    %546 = vmatprep.subr.bf16.mxu0 0
    %547 = vmatpush2.bf16.msra.mxu0 %v443
    %548 = vmatprep.subr.bf16.mxu0 0
    %549 = vmatpush2.bf16.msra.mxu0 %v442
    %550 = vmatprep.subr.bf16.mxu0 0
    %551 = vmatpush2.bf16.msra.mxu0 %v441
    %552 = vmatprep.subr.bf16.mxu0 0
    %553 = vmatpush2.bf16.msra.mxu0 %v440
    %554 = vmatprep.subr.bf16.mxu0 0
    %555 = vmatpush2.bf16.msra.mxu0 %v439
    %556 = vmatprep.subr.bf16.mxu0 0
    %557 = vmatpush2.bf16.msra.mxu0 %v438
    %558 = vmatprep.subr.bf16.mxu0 0
    %559 = vmatpush2.bf16.msra.mxu0 %v437
    %560 = vmatprep.subr.bf16.mxu0 0
    %561 = vmatpush2.bf16.msra.mxu0 %v436
    %562 = vmatprep.mubr.bf16.mxu0 %v128
    %563 = vmatmul.mubr.bf16.gmra.mxu0 %v127
    %v564 = vpop.f32.mrf.mxu0
    %v565 = vadd.f32 0.0, %v564
    %v566 = vpop.f32.mrf.mxu0
    %v567 = vpop.f32.mrf.mxu0
    %v568 = vpop.f32.mrf.mxu0
    %569 = vdwg.mxu0
    %570 = vmatprep.subr.bf16.mxu0 0
    %571 = vmatpush1.bf16.msra.mxu0 %v451
    %572 = vmatprep.subr.bf16.mxu0 0
    %573 = vmatpush1.bf16.msra.mxu0 %v450
    %574 = vmatprep.subr.bf16.mxu0 0
    %575 = vmatpush1.bf16.msra.mxu0 %v449
    %576 = vmatprep.subr.bf16.mxu0 0
    %577 = vmatpush1.bf16.msra.mxu0 %v448
    %578 = vmatprep.subr.bf16.mxu0 0
    %579 = vmatpush1.bf16.msra.mxu0 %v447
    %580 = vmatprep.subr.bf16.mxu0 0
    %581 = vmatpush1.bf16.msra.mxu0 %v446
    %582 = vmatprep.subr.bf16.mxu0 0
    %583 = vmatpush1.bf16.msra.mxu0 %v445
    %584 = vmatprep.subr.bf16.mxu0 0
    %585 = vmatpush1.bf16.msra.mxu0 %v444
    %586 = vmatprep.subr.bf16.mxu0 0
    %587 = vmatpush2.bf16.msra.mxu0 %v459
    %588 = vmatprep.subr.bf16.mxu0 0
    %589 = vmatpush2.bf16.msra.mxu0 %v458
    %590 = vmatprep.subr.bf16.mxu0 0
    %591 = vmatpush2.bf16.msra.mxu0 %v457
    %592 = vmatprep.subr.bf16.mxu0 0
    %593 = vmatpush2.bf16.msra.mxu0 %v456
    %594 = vmatprep.subr.bf16.mxu0 0
    %595 = vmatpush2.bf16.msra.mxu0 %v455
    %596 = vmatprep.subr.bf16.mxu0 0
    %597 = vmatpush2.bf16.msra.mxu0 %v454
    %598 = vmatprep.subr.bf16.mxu0 0
    %599 = vmatpush2.bf16.msra.mxu0 %v453
    %600 = vmatprep.subr.bf16.mxu0 0
    %601 = vmatpush2.bf16.msra.mxu0 %v452
    %602 = vmatprep.mubr.bf16.mxu0 %v130
    %603 = vmatmul.mubr.bf16.gmra.mxu0 %v129
    %v604 = vpop.f32.mrf.mxu0
    %v605 = vadd.f32 %v565, %v604
    %v606 = vpop.f32.mrf.mxu0
    %v607 = vpop.f32.mrf.mxu0
    %v608 = vpop.f32.mrf.mxu0
    %609 = vdwg.mxu0
    %610 = vmatprep.subr.bf16.mxu0 0
    %611 = vmatpush1.bf16.msra.mxu0 %v467
    %612 = vmatprep.subr.bf16.mxu0 0
    %613 = vmatpush1.bf16.msra.mxu0 %v466
    %614 = vmatprep.subr.bf16.mxu0 0
    %615 = vmatpush1.bf16.msra.mxu0 %v465
    %616 = vmatprep.subr.bf16.mxu0 0
    %617 = vmatpush1.bf16.msra.mxu0 %v464
    %618 = vmatprep.subr.bf16.mxu0 0
    %619 = vmatpush1.bf16.msra.mxu0 %v463
    %620 = vmatprep.subr.bf16.mxu0 0
    %621 = vmatpush1.bf16.msra.mxu0 %v462
    %622 = vmatprep.subr.bf16.mxu0 0
    %623 = vmatpush1.bf16.msra.mxu0 %v461
    %624 = vmatprep.subr.bf16.mxu0 0
    %625 = vmatpush1.bf16.msra.mxu0 %v460
    %626 = vmatprep.subr.bf16.mxu0 0
    %627 = vmatpush2.bf16.msra.mxu0 %v475
    %628 = vmatprep.subr.bf16.mxu0 0
    %629 = vmatpush2.bf16.msra.mxu0 %v474
    %630 = vmatprep.subr.bf16.mxu0 0
    %631 = vmatpush2.bf16.msra.mxu0 %v473
    %632 = vmatprep.subr.bf16.mxu0 0
    %633 = vmatpush2.bf16.msra.mxu0 %v472
    %634 = vmatprep.subr.bf16.mxu0 0
    %635 = vmatpush2.bf16.msra.mxu0 %v471
    %636 = vmatprep.subr.bf16.mxu0 0
    %637 = vmatpush2.bf16.msra.mxu0 %v470
    %638 = vmatprep.subr.bf16.mxu0 0
    %639 = vmatpush2.bf16.msra.mxu0 %v469
    %640 = vmatprep.subr.bf16.mxu0 0
    %641 = vmatpush2.bf16.msra.mxu0 %v468
    %642 = vmatprep.mubr.bf16.mxu0 %v132
    %643 = vmatmul.mubr.bf16.gmra.mxu0 %v131
    %v644 = vpop.f32.mrf.mxu0
    %v645 = vadd.f32 %v605, %v644
    %v646 = vpop.f32.mrf.mxu0
    %v647 = vpop.f32.mrf.mxu0
    %v648 = vpop.f32.mrf.mxu0
    %649 = vdwg.mxu0
    %650 = vmatprep.subr.bf16.mxu0 0
    %651 = vmatpush1.bf16.msra.mxu0 0
    %652 = vmatprep.subr.bf16.mxu0 0
    %653 = vmatpush1.bf16.msra.mxu0 0
    %654 = vmatprep.subr.bf16.mxu0 0
    %655 = vmatpush1.bf16.msra.mxu0 0
    %656 = vmatprep.subr.bf16.mxu0 0
    %657 = vmatpush1.bf16.msra.mxu0 0
    %658 = vmatprep.subr.bf16.mxu0 0
    %659 = vmatpush1.bf16.msra.mxu0 0
    %660 = vmatprep.subr.bf16.mxu0 0
    %661 = vmatpush1.bf16.msra.mxu0 0
    %662 = vmatprep.subr.bf16.mxu0 0
    %663 = vmatpush1.bf16.msra.mxu0 0
    %664 = vmatprep.subr.bf16.mxu0 0
    %665 = vmatpush1.bf16.msra.mxu0 %v476
    %666 = vmatprep.subr.bf16.mxu0 0
    %667 = vmatpush2.bf16.msra.mxu0 0
    %668 = vmatprep.subr.bf16.mxu0 0
    %669 = vmatpush2.bf16.msra.mxu0 0
    %670 = vmatprep.subr.bf16.mxu0 0
    %671 = vmatpush2.bf16.msra.mxu0 0
    %672 = vmatprep.subr.bf16.mxu0 0
    %673 = vmatpush2.bf16.msra.mxu0 0
    %674 = vmatprep.subr.bf16.mxu0 0
    %675 = vmatpush2.bf16.msra.mxu0 0
    %676 = vmatprep.subr.bf16.mxu0 0
    %677 = vmatpush2.bf16.msra.mxu0 0
    %678 = vmatprep.subr.bf16.mxu0 0
    %679 = vmatpush2.bf16.msra.mxu0 0
    %680 = vmatprep.subr.bf16.mxu0 0
    %681 = vmatpush2.bf16.msra.mxu0 0
    %682 = vmatprep.mubr.bf16.mxu0 0
    %683 = vmatmul.mubr.bf16.gmra.mxu0 %v528
    %v684 = vpop.f32.mrf.mxu0
    %v685 = vadd.f32 %v645, %v684
    %v686 = vpop.f32.mrf.mxu0
    %v687 = vpop.f32.mrf.mxu0
    %v688 = vpop.f32.mrf.mxu0
    %689 = vdwg.mxu0
    %v690 = vmax.f32 %v685, 0.0
    %v691 = vpack.c.bf16 %v690, %v690
    %v692 = vld [vmem:[%s2] sm:$0xf]
    %v693 = vld [vmem:[%s2 + $0x4] sm:$0xf]
    %v694 = vld [vmem:[%s2 + $0x8] sm:$0xf]
    %v695 = vld [vmem:[%s2 + $0xc] sm:$0xf]
    %v696 = vld [vmem:[%s2 + $0x10] sm:$0xf]
    %v697 = vld [vmem:[%s2 + $0x14] sm:$0xf]
    %v698 = vld [vmem:[%s2 + $0x18] sm:$0xf]
    %v699 = vld [vmem:[%s2 + $0x1c] sm:$0xf]
    %v700 = vld [vmem:[%s2 + $0x20] sm:$0xf]
    %v701 = vld [vmem:[%s2 + $0x24] sm:$0xf]
    %v702 = vld [vmem:[%s2 + $0x28] sm:$0xf]
    %v703 = vld [vmem:[%s2 + $0x2c] sm:$0xf]
    %v704 = vld [vmem:[%s2 + $0x30] sm:$0xf]
    %v705 = vld [vmem:[%s2 + $0x34] sm:$0xf]
    %v706 = vld [vmem:[%s2 + $0x38] sm:$0xf]
    %v707 = vld [vmem:[%s2 + $0x3c] sm:$0xf]
    %v724 = vunpack.c.l.b16 %v692
    %v725 = vunpack.c.l.b16 %v693
    %v726 = vunpack.c.l.b16 %v694
    %v727 = vunpack.c.l.b16 %v695
    %v728 = vunpack.c.l.b16 %v696
    %v729 = vunpack.c.l.b16 %v697
    %v730 = vunpack.c.l.b16 %v698
    %v731 = vunpack.c.l.b16 %v699
    %v732 = vunpack.c.l.b16 %v700
    %v733 = vunpack.c.l.b16 %v701
    %v734 = vunpack.c.l.b16 %v702
    %v735 = vunpack.c.l.b16 %v703
    %v736 = vunpack.c.l.b16 %v704
    %v737 = vunpack.c.l.b16 %v705
    %v738 = vunpack.c.l.b16 %v706
    %v739 = vunpack.c.l.b16 %v707
    %v740 = vpack.c.b16 %v725, %v724
    %v741 = vpack.c.b16 %v727, %v726
    %v742 = vpack.c.b16 %v729, %v728
    %v743 = vpack.c.b16 %v731, %v730
    %v744 = vpack.c.b16 %v733, %v732
    %v745 = vpack.c.b16 %v735, %v734
    %v746 = vpack.c.b16 %v737, %v736
    %v747 = vpack.c.b16 %v739, %v738
    %756 = vmatprep.subr.bf16.mxu0 0
    %757 = vmatpush1.bf16.msra.mxu0 %v747
    %758 = vmatprep.subr.bf16.mxu0 0
    %759 = vmatpush1.bf16.msra.mxu0 %v746
    %760 = vmatprep.subr.bf16.mxu0 0
    %761 = vmatpush1.bf16.msra.mxu0 %v745
    %762 = vmatprep.subr.bf16.mxu0 0
    %763 = vmatpush1.bf16.msra.mxu0 %v744
    %764 = vmatprep.subr.bf16.mxu0 0
    %765 = vmatpush1.bf16.msra.mxu0 %v743
    %766 = vmatprep.subr.bf16.mxu0 0
    %767 = vmatpush1.bf16.msra.mxu0 %v742
    %768 = vmatprep.subr.bf16.mxu0 0
    %769 = vmatpush1.bf16.msra.mxu0 %v741
    %770 = vmatprep.subr.bf16.mxu0 0
    %771 = vmatpush1.bf16.msra.mxu0 %v740
    %772 = vmatprep.subr.bf16.mxu0 0
    %773 = vmatpush2.bf16.msra.mxu0 0
    %774 = vmatprep.subr.bf16.mxu0 0
    %775 = vmatpush2.bf16.msra.mxu0 0
    %776 = vmatprep.subr.bf16.mxu0 0
    %777 = vmatpush2.bf16.msra.mxu0 0
    %778 = vmatprep.subr.bf16.mxu0 0
    %779 = vmatpush2.bf16.msra.mxu0 0
    %780 = vmatprep.subr.bf16.mxu0 0
    %781 = vmatpush2.bf16.msra.mxu0 0
    %782 = vmatprep.subr.bf16.mxu0 0
    %783 = vmatpush2.bf16.msra.mxu0 0
    %784 = vmatprep.subr.bf16.mxu0 0
    %785 = vmatpush2.bf16.msra.mxu0 0
    %786 = vmatprep.subr.bf16.mxu0 0
    %787 = vmatpush2.bf16.msra.mxu0 0
    %788 = vmatprep.mubr.bf16.mxu0 0
    %789 = vmatmul.mubr.bf16.gmra.mxu0 %v691
    %v790 = vpop.f32.mrf.mxu0
    %v791 = vadd.f32 0.0, %v790
    %v792 = vpop.f32.mrf.mxu0
    %v793 = vpop.f32.mrf.mxu0
    %v794 = vpop.f32.mrf.mxu0
    %795 = vdwg.mxu0
    %v796 = vmax.f32 %v791, 0.0
    %v797 = vpack.c.bf16 %v796, %v796
    %v798 = vld [vmem:[%s3] sm:$0xf]
    %v799 = vld [vmem:[%s3 + $0x4] sm:$0xf]
    %v800 = vld [vmem:[%s3 + $0x8] sm:$0xf]
    %v801 = vld [vmem:[%s3 + $0xc] sm:$0xf]
    %v802 = vld [vmem:[%s3 + $0x10] sm:$0xf]
    %v803 = vld [vmem:[%s3 + $0x14] sm:$0xf]
    %v804 = vld [vmem:[%s3 + $0x18] sm:$0xf]
    %v805 = vld [vmem:[%s3 + $0x1c] sm:$0xf]
    %v806 = vld [vmem:[%s3 + $0x20] sm:$0xf]
    %v807 = vld [vmem:[%s3 + $0x24] sm:$0xf]
    %v808 = vld [vmem:[%s3 + $0x28] sm:$0xf]
    %v809 = vld [vmem:[%s3 + $0x2c] sm:$0xf]
    %v810 = vld [vmem:[%s3 + $0x30] sm:$0xf]
    %v811 = vld [vmem:[%s3 + $0x34] sm:$0xf]
    %v812 = vld [vmem:[%s3 + $0x38] sm:$0xf]
    %v813 = vld [vmem:[%s3 + $0x3c] sm:$0xf]
    %v830 = vunpack.c.l.b16 %v798
    %v831 = vunpack.c.l.b16 %v799
    %v832 = vunpack.c.l.b16 %v800
    %v833 = vunpack.c.l.b16 %v801
    %v834 = vunpack.c.l.b16 %v802
    %v835 = vunpack.c.l.b16 %v803
    %v836 = vunpack.c.l.b16 %v804
    %v837 = vunpack.c.l.b16 %v805
    %v838 = vunpack.c.l.b16 %v806
    %v839 = vunpack.c.l.b16 %v807
    %v840 = vunpack.c.l.b16 %v808
    %v841 = vunpack.c.l.b16 %v809
    %v842 = vunpack.c.l.b16 %v810
    %v843 = vunpack.c.l.b16 %v811
    %v844 = vunpack.c.l.b16 %v812
    %v845 = vunpack.c.l.b16 %v813
    %v846 = vpack.c.b16 %v831, %v830
    %v847 = vpack.c.b16 %v833, %v832
    %v848 = vpack.c.b16 %v835, %v834
    %v849 = vpack.c.b16 %v837, %v836
    %v850 = vpack.c.b16 %v839, %v838
    %v851 = vpack.c.b16 %v841, %v840
    %v852 = vpack.c.b16 %v843, %v842
    %v853 = vpack.c.b16 %v845, %v844
    %862 = vmatprep.subr.bf16.mxu0 0
    %863 = vmatpush1.bf16.msra.mxu0 %v853
    %864 = vmatprep.subr.bf16.mxu0 0
    %865 = vmatpush1.bf16.msra.mxu0 %v852
    %866 = vmatprep.subr.bf16.mxu0 0
    %867 = vmatpush1.bf16.msra.mxu0 %v851
    %868 = vmatprep.subr.bf16.mxu0 0
    %869 = vmatpush1.bf16.msra.mxu0 %v850
    %870 = vmatprep.subr.bf16.mxu0 0
    %871 = vmatpush1.bf16.msra.mxu0 %v849
    %872 = vmatprep.subr.bf16.mxu0 0
    %873 = vmatpush1.bf16.msra.mxu0 %v848
    %874 = vmatprep.subr.bf16.mxu0 0
    %875 = vmatpush1.bf16.msra.mxu0 %v847
    %876 = vmatprep.subr.bf16.mxu0 0
    %877 = vmatpush1.bf16.msra.mxu0 %v846
    %878 = vmatprep.subr.bf16.mxu0 0
    %879 = vmatpush2.bf16.msra.mxu0 0
    %880 = vmatprep.subr.bf16.mxu0 0
    %881 = vmatpush2.bf16.msra.mxu0 0
    %882 = vmatprep.subr.bf16.mxu0 0
    %883 = vmatpush2.bf16.msra.mxu0 0
    %884 = vmatprep.subr.bf16.mxu0 0
    %885 = vmatpush2.bf16.msra.mxu0 0
    %886 = vmatprep.subr.bf16.mxu0 0
    %887 = vmatpush2.bf16.msra.mxu0 0
    %888 = vmatprep.subr.bf16.mxu0 0
    %889 = vmatpush2.bf16.msra.mxu0 0
    %890 = vmatprep.subr.bf16.mxu0 0
    %891 = vmatpush2.bf16.msra.mxu0 0
    %892 = vmatprep.subr.bf16.mxu0 0
    %893 = vmatpush2.bf16.msra.mxu0 0
    %894 = vmatprep.mubr.bf16.mxu0 0
    %895 = vmatmul.mubr.bf16.gmra.mxu0 %v797
    %v896 = vpop.f32.mrf.mxu0
    %v897 = vadd.f32 0.0, %v896
    %v898 = vpop.f32.mrf.mxu0
    %v899 = vpop.f32.mrf.mxu0
    %v900 = vpop.f32.mrf.mxu0
    %901 = vdwg.mxu0
    %v902 = vpack.c.bf16 %v897, %v897
    %v905 = vunpack.c.l.s4 1966171168
    %v906 = vunpack.c.0.s8 %v905
    %v907 = vlaneseq
    %v908 = vshrl.u32 %v907, 7
    %v909 = vsub.s32 %v906, %v908
    %v910 = vrot.slane %v902, %v909
    %v911 = vcombine.high %v910, %v910
    %v913 = vunpack.c.l.s4 1966171168
    %v914 = vunpack.c.0.s8 %v913
    %v915 = vlaneseq
    %v916 = vshrl.u32 %v915, 7
    %v917 = vsub.s32 %v914, %v916
    %v918 = vrot.slane %v910, %v917
    %v920 = vunpack.c.l.s4 1966171168
    %v921 = vunpack.c.0.s8 %v920
    %v922 = vlaneseq
    %v923 = vshrl.u32 %v922, 7
    %v924 = vsub.s32 %v921, %v923
    %v925 = vrot.slane %v911, %v924
    %v926 = vcombine.high %v918, %v918
    %v927 = vcombine.high %v925, %v925
    %932 = vst [vmem:[#allocation5] sm:$0x1] %v918
    %933 = vst [vmem:[#allocation5 + $0x1] sm:$0x1] %v925
    %934 = vst [vmem:[#allocation5 + $0x2] sm:$0x1] %v926
    %935 = vst [vmem:[#allocation5 + $0x3] sm:$0x1] %v927
    // Predicated region
    $region22: #{mlp_forward.1} parent=1 // pred_check
      _
    $region23: #{mlp_forward.1} parent=1 // pred_check_branch
      %937 = sbr.rel (0) target = $region25
    $region24: #{mlp_forward.1} parent=1 // pred_region
      %s939 = ssub.s32 64, 16
      %940 = vsyncadd [#allocation4], %s939
      %s941 = sshll.u32 [#allocation5], 4
      %s942 = int_to_ptr.vmem [resolvable:$true] %s941
      %947 = dma.vmem_to_hbm [thread:$0]  %s942, 16, %s4, [#allocation4], 16, 16, 1
    $region25: #{mlp_forward.1} parent=1 // pred_fallthru
      _
    // Predicated region
    $region26: #{mlp_forward.1} parent=1 // pred_check
      _
    $region27: #{mlp_forward.1} parent=1 // pred_check_branch
      %949 = sbr.rel (0) target = $region29
    $region28: #{mlp_forward.1} parent=1 // pred_region
      %950 = dma.done [#allocation4], 64
    $region29: #{mlp_forward.1} parent=1 // pred_fallthru
      _
    %951 = vsyncpa [#allocation3], 1
    %952 = vsyncpa [#allocation4], 1

</llo_original>
